<compile_context>
chip_gen: v5e
topology: v5e:2x2
jax: 0.10.0
libtpu: 0.0.40
codegen_flags: <defaults>
</compile_context>

<pallas_src>
import functools

import jax
import jax.numpy as jnp
from jax.experimental import pallas as pl
from jax.experimental.pallas import tpu as pltpu

IGNORE_INDEX = -100  # nn.CrossEntropyLoss default

_VMEM_BUDGET_BYTES = 40 * 1024 * 1024   # safe live-set target on v5e/v6e/v7x
_MAX_ROWS_PER_BLOCK = 1024              # amortizes ~0.35 us/step pipeline overhead


def _round_up(x, m):
    return (x + m - 1) // m * m


def _live_bytes_per_row(vocab, itemsize):
    """Estimated live VMEM bytes per row of the block.

    double-buffered native input block (2*itemsize) + ~2 block-sized f32 temps
    (d and the exp intermediate, 8 bytes) + labels column slack.
    """
    return vocab * (2 * itemsize + 8) + 16


def _pick_row_tile(n_rows, vocab, itemsize, max_rows):
    """Rows per grid step: as large as the VMEM budget allows, dtype-aligned."""
    row_align = 8 * max(1, 4 // itemsize)          # f32 -> 8, bf16 -> 16, int8/fp8 -> 32
    per_row = _live_bytes_per_row(vocab, itemsize)
    rows = max(1, _VMEM_BUDGET_BYTES // per_row)
    rows = min(rows, max_rows)
    rows = min(rows, _round_up(n_rows, row_align))
    rows = max(row_align, (rows // row_align) * row_align)
    return rows


def _ce_kernel(logits_ref, labels_ref, psum_ref):
    """One row-tile: per-row stable log-sum-exp CE, partial loss sum for the block."""
    raw = logits_ref[...]                                  # (R, V) native dtype
    lbl = labels_ref[...]                                  # (R, 1) int32

    # Stable log-sum-exp along the vocab (lane) axis, in f32.  `x32` dies as soon as
    # `d` is formed; `d` is the only block-sized f32 value that stays live.
    x32 = raw.astype(jnp.float32)
    m = jnp.max(x32, axis=-1, keepdims=True)               # (R, 1)
    d = x32 - m
    s = jnp.sum(jnp.exp(d), axis=-1, keepdims=True)        # (R, 1)

    # Label gather: (1, V) lane iota broadcast against the (R, 1) labels; select on
    # the *native-dtype* block (exact: at most one non-zero per row, rest exact 0),
    # reduce along lanes, then cast only the per-row result to f32.
    col = jax.lax.broadcasted_iota(jnp.int32, (1, raw.shape[-1]), 1)
    tgt = jnp.sum(
        jnp.where(col == lbl, raw, jnp.array(0, dtype=raw.dtype)),
        axis=-1, keepdims=True).astype(jnp.float32)        # (R, 1)

    # Masked per-token loss.  Rows with IGNORE_INDEX (including padded / OOB rows of
    # the last partial block) are zeroed *before* the cross-row reduction, so any
    # NaN/Inf garbage in those rows never contaminates valid rows.
    valid = lbl != IGNORE_INDEX
    per_tok = jnp.where(valid, (m - tgt) + jnp.log(s), 0.0)
    psum_ref[...] = jnp.sum(per_tok, keepdims=True)        # (1, 1)


@functools.partial(jax.jit, static_argnames=("shift_labels", "max_rows_per_block"))
def causal_lm_loss(logits, labels, shift_labels=True,
                   max_rows_per_block=_MAX_ROWS_PER_BLOCK):
    """Equivalent of CausalLMLoss.forward.

    logits: (B, T, V) float (f32 or bf16)
    labels: (B, T) int
    returns scalar float32 loss (mean CE over non-ignored shifted tokens).
    """
    B, T, V = logits.shape
    labels = labels.astype(jnp.int32)

    if shift_labels:
        # Shift the *labels* (tiny) instead of slicing the big logits: logits row
        # (b, t) is scored against labels[b, t+1]; the last position of each sequence
        # is ignored.  Identical to (logits[:, :-1], labels[:, 1:]).
        labels = jnp.concatenate(
            [labels[:, 1:], jnp.full((B, 1), IGNORE_INDEX, jnp.int32)], axis=1)

    # Mean denominator depends only on the tiny labels array: compute it in JAX and
    # drop the per-block count output entirely.
    num_valid = jnp.sum(labels != IGNORE_INDEX).astype(jnp.float32)

    N = B * T
    flat_logits = logits.reshape(N, V)          # merge leading dims: free, no copy
    flat_labels = labels.reshape(N)

    itemsize = jnp.dtype(logits.dtype).itemsize
    row_tile = _pick_row_tile(N, V, itemsize, max_rows_per_block)
    Np = _round_up(N, row_tile)
    G = Np // row_tile

    # Pad only the tiny labels column; padded rows carry IGNORE_INDEX so the
    # (possibly out-of-bounds) logits rows of the last partial block are masked.
    flat_labels = jnp.pad(flat_labels, ((0, Np - N),), constant_values=IGNORE_INDEX)
    labels_col = flat_labels.reshape(Np, 1)

    # Explicit scoped-VMEM limit derived from the live-set model (+ headroom),
    # capped below v7x's 64 MiB physical VMEM per TensorCore.
    est_live = row_tile * _live_bytes_per_row(V, itemsize) + (2 << 20)
    vmem_limit = int(min(56 * 1024 * 1024, max(24 * 1024 * 1024, est_live)))

    psum = pl.pallas_call(
        _ce_kernel,
        out_shape=jax.ShapeDtypeStruct((G, 1), jnp.float32),
        grid_spec=pltpu.PrefetchScalarGridSpec(
            num_scalar_prefetch=0,
            grid=(G,),
            in_specs=[
                # Full-vocab block: lane dim equals the array dim (Mosaic masks the
                # unaligned tail), so no vocab padding of the logits is required.
                pl.BlockSpec((row_tile, V), lambda i: (i, 0)),
                pl.BlockSpec((row_tile, 1), lambda i: (i, 0)),
            ],
            out_specs=pl.BlockSpec((1, 1), lambda i: (i, 0)),
        ),
        compiler_params=pltpu.CompilerParams(
            dimension_semantics=("parallel",),    # lets v7x shard rows across 2 TCs
            vmem_limit_bytes=vmem_limit),
        cost_estimate=pl.CostEstimate(
            flops=6 * N * V,
            transcendentals=N * V,
            bytes_accessed=N * V * itemsize + Np * 4 + 4 * G),
    )(flat_logits, labels_col)

    # Final tiny reduce + mean over non-ignored tokens (nn.CrossEntropyLoss default).
    return (jnp.sum(psum) / num_valid).astype(jnp.float32)


def _reference_loss(logits, labels, shift_labels=True):
    """Pure-JAX reference mirroring torch semantics (for sanity checking)."""
    if shift_labels:
        logits = logits[..., :-1, :]
        labels = labels[..., 1:]
    V = logits.shape[-1]
    x = logits.reshape(-1, V).astype(jnp.float32)
    y = labels.reshape(-1)
    lse = jax.scipy.special.logsumexp(x, axis=-1)
    safe_y = jnp.where(y == IGNORE_INDEX, 0, y)
    tgt = jnp.take_along_axis(x, safe_y[:, None], axis=-1)[:, 0]
    valid = (y != IGNORE_INDEX)
    per = jnp.where(valid, lse - tgt, 0.0)
    return jnp.sum(per) / jnp.sum(valid.astype(jnp.float32))


if __name__ == "__main__":
    key = jax.random.PRNGKey(0)
    k1, k2, k3, k4, k5, k6 = jax.random.split(key, 6)

    # Test 1: f32 logits, vocab not a multiple of 128, single row block.
    B, T, V = 2, 8, 100
    logits = jax.random.normal(k1, (B, T, V), dtype=jnp.float32)
    labels = jax.random.randint(k2, (B, T), 0, V, dtype=jnp.int32)

    loss = jax.block_until_ready(causal_lm_loss(logits, labels, shift_labels=True))
    ref = _reference_loss(logits, labels, shift_labels=True)
    assert jnp.allclose(loss, ref, rtol=1e-5, atol=1e-5), (loss, ref)

    # Test 2: bf16 logits, row count not a multiple of the tile (exercises the
    # partial last block + IGNORE_INDEX masking path) and an explicit ignored label.
    B2, T2, V2 = 3, 7, 130
    logits2 = jax.random.normal(k3, (B2, T2, V2), dtype=jnp.bfloat16)
    labels2 = jax.random.randint(k4, (B2, T2), 0, V2, dtype=jnp.int32)
    labels2 = labels2.at[0, 3].set(IGNORE_INDEX)

    loss2 = jax.block_until_ready(causal_lm_loss(logits2, labels2, shift_labels=True))
    ref2 = _reference_loss(logits2, labels2, shift_labels=True)
    assert jnp.allclose(loss2, ref2, rtol=1e-3, atol=1e-3), (loss2, ref2)

    # Test 3: force multiple grid steps (G > 1) to exercise the per-block partial
    # sums and the "parallel" row axis with partial-block masking.
    B3, T3, V3 = 4, 16, 100
    logits3 = jax.random.normal(k5, (B3, T3, V3), dtype=jnp.float32)
    labels3 = jax.random.randint(k6, (B3, T3), 0, V3, dtype=jnp.int32)

    loss3 = jax.block_until_ready(
        causal_lm_loss(logits3, labels3, shift_labels=True, max_rows_per_block=8))
    ref3 = _reference_loss(logits3, labels3, shift_labels=True)
    assert jnp.allclose(loss3, ref3, rtol=1e-5, atol=1e-5), (loss3, ref3)

    print("KERNEL_OK")
</pallas_src>

<mosaic_0001>
module attributes {stable_mosaic.version = 11 : i64} {
  func.func @_ce_kernel(%arg0: i32, %arg1: memref<16x100xf32, #tpu.memory_space<vmem>>, %arg2: memref<16x1xi32, #tpu.memory_space<vmem>>, %arg3: memref<1x1xf32, #tpu.memory_space<vmem>>) attributes {dimension_semantics = [#tpu.dimension_semantics<parallel>], iteration_bounds = array<i64: 1>, scalar_prefetch = 0 : i64, scratch_operands = 0 : i64, tpu.core_type = #tpu.core_type<tc>, window_params = [{transform_indices = @transform_0, window_bounds = array<i64: 16, 100>}, {transform_indices = @transform_1, window_bounds = array<i64: 16, 1>}, {transform_indices = @transform_2, window_bounds = array<i64: 1, 1>}]} {
    %c0 = arith.constant 0 : index
    %c0_0 = arith.constant 0 : index
    %0 = vector.load %arg1[%c0, %c0_0] : memref<16x100xf32, #tpu.memory_space<vmem>>, vector<16x100xf32>
    %c0_1 = arith.constant 0 : index
    %c0_2 = arith.constant 0 : index
    %1 = vector.load %arg2[%c0_1, %c0_2] : memref<16x1xi32, #tpu.memory_space<vmem>>, vector<16x1xi32>
    %cst = arith.constant dense<0xFF800000> : vector<16xf32>
    %2 = vector.multi_reduction <maximumf>, %0, %cst [1] : vector<16x100xf32> to vector<16xf32>
    %3 = vector.shape_cast %2 : vector<16xf32> to vector<16x1xf32>
    %4 = vector.broadcast %3 : vector<16x1xf32> to vector<16x100xf32>
    %5 = arith.subf %0, %4 : vector<16x100xf32>
    %6 = math.exp %5 : vector<16x100xf32>
    %cst_3 = arith.constant dense<0.000000e+00> : vector<16xf32>
    %7 = vector.multi_reduction <add>, %6, %cst_3 [1] : vector<16x100xf32> to vector<16xf32>
    %8 = vector.shape_cast %7 : vector<16xf32> to vector<16x1xf32>
    %9 = tpu.iota {dimensions = array<i32: 1>} : vector<1x100xi32>
    %10 = vector.broadcast %9 : vector<1x100xi32> to vector<16x100xi32>
    %11 = vector.broadcast %1 : vector<16x1xi32> to vector<16x100xi32>
    %12 = arith.cmpi eq, %10, %11 : vector<16x100xi32>
    %cst_4 = arith.constant 0.000000e+00 : f32
    %13 = vector.broadcast %cst_4 : f32 to vector<16x100xf32>
    %14 = arith.select %12, %0, %13 : vector<16x100xi1>, vector<16x100xf32>
    %cst_5 = arith.constant dense<0.000000e+00> : vector<16xf32>
    %15 = vector.multi_reduction <add>, %14, %cst_5 [1] : vector<16x100xf32> to vector<16xf32>
    %16 = vector.shape_cast %15 : vector<16xf32> to vector<16x1xf32>
    %c-100_i32 = arith.constant -100 : i32
    %17 = vector.broadcast %c-100_i32 : i32 to vector<16x1xi32>
    %18 = arith.cmpi ne, %1, %17 : vector<16x1xi32>
    %19 = arith.subf %3, %16 : vector<16x1xf32>
    %20 = math.log %8 : vector<16x1xf32>
    %21 = arith.addf %19, %20 : vector<16x1xf32>
    %cst_6 = arith.constant 0.000000e+00 : f32
    %22 = vector.broadcast %cst_6 : f32 to vector<16x1xf32>
    %23 = arith.select %18, %21, %22 : vector<16x1xi1>, vector<16x1xf32>
    %24 = vector.shape_cast %23 : vector<16x1xf32> to vector<1x16x1xf32>
    %cst_7 = arith.constant dense<0.000000e+00> : vector<1xf32>
    %25 = vector.multi_reduction <add>, %24, %cst_7 [1, 2] : vector<1x16x1xf32> to vector<1xf32>
    %26 = vector.shape_cast %25 : vector<1xf32> to vector<1x1x1xf32>
    %27 = vector.extract %26[0, 0, 0] : f32 from vector<1x1x1xf32>
    %28 = vector.broadcast %27 : f32 to vector<1x1xf32>
    %c0_8 = arith.constant 0 : index
    %c0_9 = arith.constant 0 : index
    %29 = vector.load %arg3[%c0_8, %c0_9] : memref<1x1xf32, #tpu.memory_space<vmem>>, vector<1x1xf32>
    tpu.vector_store %arg3[%c0_8, %c0_9], %28 {strides = array<i32>} : memref<1x1xf32, #tpu.memory_space<vmem>>, vector<1x1xf32>,
    return
  }
  func.func @transform_0(%arg0: i32) -> (i32, i32) {
    %c0_i32 = arith.constant 0 : i32
    %c0_i32_0 = arith.constant 0 : i32
    return %arg0, %c0_i32 : i32, i32
  }
  func.func @transform_1(%arg0: i32) -> (i32, i32) {
    %c0_i32 = arith.constant 0 : i32
    %c0_i32_0 = arith.constant 0 : i32
    return %arg0, %c0_i32 : i32, i32
  }
  func.func @transform_2(%arg0: i32) -> (i32, i32) {
    %c0_i32 = arith.constant 0 : i32
    %c0_i32_0 = arith.constant 0 : i32
    return %arg0, %c0_i32 : i32, i32
  }
}

</mosaic_0001>

<llo_original>
// kernel: causal_lm_loss.1
$region0: #{causal_lm_loss.1}
  #allocation0 [shape = 'u32[]', space=smem, size = 0x4, offset = 0x4, fixed_abs, tag = 'smem constant byte address 0x4 - core index']
  #allocation1 [shape = 'u32[72,128]{1,0:T(1,128)}', space=vmem, size = 0x9000, scoped, tag = 'internal scratch']
  %s0 = inlined_call_operand.vmem [shape: f32[16,100], index: 0, kind: input, shape index: {}]
  %s1 = inlined_call_operand.vmem [shape: s32[16,1], index: 1, kind: input, shape index: {}]
  %s2 = inlined_call_operand.hbm [shape: f32[1,1], index: 2, kind: output, shape index: {}]
  %s3 = sld [smem:[#allocation0]]
  $region18: #{causal_lm_loss.1} parent=0
    _
  %s5 = ssub.s32 1, %s3
  %s6 = scalar_select 0, %s5, %s3
  $region1: #{causal_lm_loss.1} parent=0
    #allocation2 [shape = 'u8[512]{0}', space=vmem, size = 0x400, scoped, tag = 'output window, operand 0, single buffered']
    #allocation3 [shape = 's32[1]{0}', space=sflag, size = 0x4, scoped, tag = 'scoped memory for causal_lm_loss.1']
    %7 = vsyncpa [#allocation3], 0
    // Predicated region
    $region2: #{causal_lm_loss.1} parent=1 // pred_check
      _
    $region3: #{causal_lm_loss.1} parent=1 // pred_check_branch
      %9 = sbr.rel (0) target = $region5
    $region4: #{causal_lm_loss.1} parent=1 // pred_region
      _
    $region5: #{causal_lm_loss.1} parent=1 // pred_fallthru
      _
    // Predicated region
    $region6: #{causal_lm_loss.1} parent=1 // pred_check
      _
    $region7: #{causal_lm_loss.1} parent=1 // pred_check_branch
      %11 = sbr.rel (0) target = $region9
    $region8: #{causal_lm_loss.1} parent=1 // pred_region
      _
    $region9: #{causal_lm_loss.1} parent=1 // pred_fallthru
      _
    %v12 = vld [vmem:[%s0] sm:$0xff]
    %v13 = vld [vmem:[%s0 + $0x8] sm:$0xff]
    %v14 = vld [vmem:[%s1] sm:$0xff]
    %v15 = vld [vmem:[%s1 + $0x8] sm:$0xff]
    %vm16 = vcmask 818176
    %v17 = vsel %vm16, %v12, -inf
    %18 = vmax.xlane.f32.xlu0 %v17
    %v19 = vpop.xlane.xlu0 %18
    %v20 = vsel %vm16, %v13, -inf
    %21 = vmax.xlane.f32.xlu0 %v20
    %v22 = vpop.xlane.xlu0 %21
    %v23 = vsub.f32 %v12, %v19
    %v24 = vsub.f32 %v13, %v22
    %v25 = vmul.f32 %v23, 1.442695
    %v26 = vpow.pop %v25
    %v27 = vmul.f32 %v24, 1.442695
    %v28 = vpow.pop %v27
    %v29 = vsel %vm16, %v26, 0.0
    %30 = vadd.xlane.f32.xlu0 %v29
    %v31 = vpop.xlane.xlu0 %30
    %v32 = vsel %vm16, %v28, 0.0
    %33 = vadd.xlane.f32.xlu0 %v32
    %v34 = vpop.xlane.xlu0 %33
    %v35 = vlaneseq
    %v36 = vand.u32 %v35, 127
    %37 = vset.pattern.permute.xlu0 0
    %38 = vperm.xlu0 %37, %v14
    %v39 = vpop.permute.xlu0 %38
    %40 = vset.pattern.permute.xlu0 0
    %41 = vperm.xlu0 %40, %v15
    %v42 = vpop.permute.xlu0 %41
    %vm43 = vcmp.eq.s32.totalorder %v36, %v39
    %vm44 = vcmp.eq.s32.totalorder %v36, %v42
    %v45 = vsel %vm43, %v12, 0.0
    %v46 = vsel %vm44, %v13, 0.0
    %v47 = vsel %vm16, %v45, 0.0
    %48 = vadd.xlane.f32.xlu0 %v47
    %v49 = vpop.xlane.xlu0 %48
    %v50 = vsel %vm16, %v46, 0.0
    %51 = vadd.xlane.f32.xlu0 %v50
    %v52 = vpop.xlane.xlu0 %51
    %vm53 = vcmp.ne.s32.totalorder %v14, 4294967196
    %vm54 = vcmp.ne.s32.totalorder %v15, 4294967196
    %v55 = vsub.f32 %v19, %v49
    %v56 = vsub.f32 %v22, %v52
    %v57 = vlog2.pop %v31
    %v58 = vmul.f32 %v57, 0.6931472
    %v59 = vlog2.pop %v34
    %v60 = vmul.f32 %v59, 0.6931472
    %v61 = vadd.f32 %v55, %v58
    %v62 = vadd.f32 %v56, %v60
    %v63 = vsel %vm53, %v61, 0.0
    %v64 = vsel %vm54, %v62, 0.0
    %vm65 = vcmask 7168
    %v66 = vsel %vm65, %v63, 0.0
    %v67 = vsel %vm65, %v64, 0.0
    %v68 = vadd.f32 %v66, %v67
    %69 = vadd.xlane.f32.xlu0 %v68
    %v70 = vpop.xlane.xlu0 %69
    %v71 = vrot.slane %v70, 4
    %v72 = vadd.f32 %v70, %v71
    %v73 = vrot.slane %v72, 2
    %v74 = vadd.f32 %v72, %v73
    %v75 = vrot.slane %v74, 1
    %v76 = vadd.f32 %v74, %v75
    %s77 = vtos %v76
    %v78 = vstv %s77
    %vm79 = vcmask 0
    %80 = vst.msk [vmem:[#allocation2] sm:$0x1] %vm79, %v78
    // Predicated region
    $region10: #{causal_lm_loss.1} parent=1 // pred_check
      _
    $region11: #{causal_lm_loss.1} parent=1 // pred_check_branch
      %82 = sbr.rel (0) target = $region13
    $region12: #{causal_lm_loss.1} parent=1 // pred_region
      %84 = vsyncadd [#allocation3], 0
      %s86 = sshll.u32 [#allocation2], 4
      %s87 = int_to_ptr.vmem [resolvable:$true] %s86
      %s88 = sshll.u32 %s2, 4
      %s89 = int_to_ptr.hbm [resolvable:$true] %s88
      %91 = dma.vmem_to_hbm [thread:$0]  %s87, 16, %s89, [#allocation3]
    $region13: #{causal_lm_loss.1} parent=1 // pred_fallthru
      _
    // Predicated region
    $region14: #{causal_lm_loss.1} parent=1 // pred_check
      _
    $region15: #{causal_lm_loss.1} parent=1 // pred_check_branch
      %93 = sbr.rel (0) target = $region17
    $region16: #{causal_lm_loss.1} parent=1 // pred_region
      %95 = dma.done [#allocation3], 16
    $region17: #{causal_lm_loss.1} parent=1 // pred_fallthru
      _
    %96 = vsyncpa [#allocation3], 1

</llo_original>
